<compile_context>
chip_gen: v5e
topology: v5e:2x2
jax: 0.10.0
libtpu: 0.0.40
codegen_flags: <defaults>
</compile_context>

<pallas_src>
import jax
import jax.numpy as jnp
from jax import lax
from jax.experimental import pallas as pl
from jax.experimental.pallas import tpu as pltpu


def _round_up(a, m):
    return (a + m - 1) // m * m


# ------------------------- fused Pallas kernel -------------------------

def conv_relu_pool_kernel(p_ref, w_ref, b_ref, o_ref):
    # p_ref: (1, tp, Kp) bf16 im2col patches for pool-window position q
    # w_ref: (Kp, Cp)    bf16 weights (K and Cout zero-padded)
    # b_ref: (1, Cp)     f32  bias (Cout zero-padded)
    # o_ref: (tp, Cp)    f32  pooled output block (resident across the q axis)
    q = pl.program_id(1)
    acc = jnp.dot(p_ref[0], w_ref[...], preferred_element_type=jnp.float32)
    val = jnp.maximum(acc + b_ref[...], 0.0)          # conv + bias + ReLU

    @pl.when(q == 0)
    def _():
        o_ref[...] = val

    @pl.when(q > 0)
    def _():
        o_ref[...] = jnp.maximum(o_ref[...], val)     # 2x2 max-pool accumulate


# ------------------------- wrapper -------------------------

@jax.jit
def alexnet_conv1_pallas(x, weight, bias):
    """x: (N, 3, H, W) NCHW.  Runs the fused conv1 block in Pallas and, like
    the PyTorch module, returns the original input as the module output
    (the pooled result is returned too, for verification)."""
    n, cin, h, w = x.shape
    cout, _, kh, kw = weight.shape
    stride = 4

    oh = (h - kh) // stride + 1
    ow = (w - kw) // stride + 1
    oh2, ow2 = oh // 2, ow // 2               # MaxPool2d(2) floors odd extents

    k = cin * kh * kw
    kp = _round_up(k, 128)                    # 363 -> 384
    cp = _round_up(cout, 128)                 # 64  -> 128 (lane-dense output)

    # im2col in one fused XLA op; feature dim ordered (Cin, KH, KW), matching
    # PyTorch's (Cout, Cin, KH, KW) weight flattening.
    xb = x.astype(jnp.bfloat16)
    patches = lax.conv_general_dilated_patches(
        xb, filter_shape=(kh, kw), window_strides=(stride, stride),
        padding="VALID", dimension_numbers=("NCHW", "OIHW", "NCHW"))
    # (N, K, OH, OW) -> (N, OH, OW, K); crop to even spatial extent (pool floor)
    patches = jnp.transpose(patches, (0, 2, 3, 1))[:, :2 * oh2, :2 * ow2, :]
    # group the 4 positions of each 2x2 pooling window onto a leading axis
    patches = patches.reshape(n, oh2, 2, ow2, 2, k)
    patches = jnp.transpose(patches, (2, 4, 0, 1, 3, 5)).reshape(
        4, n * oh2 * ow2, k)

    p = n * oh2 * ow2
    tp = min(512, _round_up(p, 8))            # rows of P per grid step
    pp = _round_up(p, tp)
    patches = jnp.pad(patches, ((0, 0), (0, pp - p), (0, kp - k)))

    w2d = jnp.pad(weight.reshape(cout, k).T.astype(jnp.bfloat16),
                  ((0, kp - k), (0, cp - cout)))                     # (Kp, Cp)
    b2d = jnp.pad(bias.reshape(1, cout).astype(jnp.float32),
                  ((0, 0), (0, cp - cout)))                          # (1, Cp)

    out = pl.pallas_call(
        conv_relu_pool_kernel,
        out_shape=jax.ShapeDtypeStruct((pp, cp), jnp.float32),
        grid=(pp // tp, 4),
        in_specs=[
            pl.BlockSpec((1, tp, kp), lambda i, q: (q, i, 0)),
            pl.BlockSpec((kp, cp), lambda i, q: (0, 0)),
            pl.BlockSpec((1, cp), lambda i, q: (0, 0)),
        ],
        out_specs=pl.BlockSpec((tp, cp), lambda i, q: (i, 0)),
        compiler_params=pltpu.CompilerParams(
            dimension_semantics=("parallel", "arbitrary")),
    )(patches, w2d, b2d)

    pooled = out[:p, :cout].reshape(n, oh2, ow2, cout)
    pooled_nchw = jnp.transpose(pooled, (0, 3, 1, 2))

    # PyTorch forward returns `inputs`; the conv output is computed but unused.
    return x, pooled_nchw


# ------------------------- reference -------------------------

def reference_conv1(x, weight, bias):
    # Same bf16 inputs / f32 accumulation as the kernel.
    y = lax.conv_general_dilated(
        x.astype(jnp.bfloat16), weight.astype(jnp.bfloat16),
        window_strides=(4, 4), padding="VALID",
        dimension_numbers=("NCHW", "OIHW", "NCHW"),
        preferred_element_type=jnp.float32)
    y = jnp.maximum(y + bias.reshape(1, -1, 1, 1), 0.0)
    y = lax.reduce_window(y, -jnp.inf, lax.max,
                          window_dimensions=(1, 1, 2, 2),
                          window_strides=(1, 1, 2, 2),
                          padding="VALID")
    return y


# ------------------------- main -------------------------

if __name__ == "__main__":
    key = jax.random.PRNGKey(0)
    kx, kw_, kb = jax.random.split(key, 3)

    # Small input consistent with the module: NCHW, 3 input channels.
    N, CIN, H, W = 2, 3, 63, 63
    x = jax.random.normal(kx, (N, CIN, H, W), dtype=jnp.float32)

    # Parameter shapes from nn.Conv2d(3, 64, (11, 11), stride=4).
    weight = jax.random.normal(kw_, (64, 3, 11, 11), dtype=jnp.float32) * 0.05
    bias = jax.random.normal(kb, (64,), dtype=jnp.float32) * 0.05

    out, pooled = alexnet_conv1_pallas(x, weight, bias)
    jax.block_until_ready(out)
    jax.block_until_ready(pooled)

    # Module semantics: forward returns its input unchanged.
    assert out.shape == x.shape
    assert bool(jnp.array_equal(out, x))

    # Verify the fused Pallas conv/relu/maxpool path against the lax reference.
    ref = reference_conv1(x, weight, bias)
    assert pooled.shape == ref.shape == (N, 64, 7, 7)
    assert bool(jnp.allclose(pooled, ref, atol=1e-2, rtol=1e-2))

    print("KERNEL_OK")
</pallas_src>

<mosaic_0001>
module attributes {stable_mosaic.version = 11 : i64} {
  func.func @conv_relu_pool_kernel(%arg0: i32, %arg1: i32, %arg2: memref<1x104x384xbf16, #tpu.memory_space<vmem>>, %arg3: memref<384x128xbf16, #tpu.memory_space<vmem>>, %arg4: memref<1x128xf32, #tpu.memory_space<vmem>>, %arg5: memref<104x128xf32, #tpu.memory_space<vmem>>) attributes {dimension_semantics = [#tpu.dimension_semantics<parallel>, #tpu.dimension_semantics<arbitrary>], iteration_bounds = array<i64: 1, 4>, scalar_prefetch = 0 : i64, scratch_operands = 0 : i64, tpu.core_type = #tpu.core_type<tc>, window_params = [{transform_indices = @transform_0, window_bounds = array<i64: 1, 104, 384>}, {pipeline_mode = #tpu.pipeline_mode<synchronous>, transform_indices = @transform_1, window_bounds = array<i64: 384, 128>}, {pipeline_mode = #tpu.pipeline_mode<synchronous>, transform_indices = @transform_2, window_bounds = array<i64: 1, 128>}, {transform_indices = @transform_3, window_bounds = array<i64: 104, 128>}]} {
    %c0 = arith.constant 0 : index
    %c0_0 = arith.constant 0 : index
    %c0_1 = arith.constant 0 : index
    %0 = vector.load %arg2[%c0, %c0_0, %c0_1] : memref<1x104x384xbf16, #tpu.memory_space<vmem>>, vector<1x104x384xbf16>
    %1 = vector.shape_cast %0 : vector<1x104x384xbf16> to vector<104x384xbf16>
    %c0_2 = arith.constant 0 : index
    %c0_3 = arith.constant 0 : index
    %2 = vector.load %arg3[%c0_2, %c0_3] : memref<384x128xbf16, #tpu.memory_space<vmem>>, vector<384x128xbf16>
    %cst = arith.constant dense<0.000000e+00> : vector<104x128xf32>
    %3 = tpu.matmul %1, %2, %cst {dimension_numbers = #tpu.dot_dimension_numbers<[1], [0], [0], [1], [0, 0, 1, 1], [], []>} : vector<104x384xbf16>, vector<384x128xbf16>, vector<104x128xf32> -> vector<104x128xf32>
    %c0_4 = arith.constant 0 : index
    %c0_5 = arith.constant 0 : index
    %4 = vector.load %arg4[%c0_4, %c0_5] : memref<1x128xf32, #tpu.memory_space<vmem>>, vector<1x128xf32>
    %5 = vector.broadcast %4 : vector<1x128xf32> to vector<104x128xf32>
    %6 = arith.addf %3, %5 : vector<104x128xf32>
    %cst_6 = arith.constant 0.000000e+00 : f32
    %7 = vector.broadcast %cst_6 : f32 to vector<104x128xf32>
    %8 = arith.maximumf %6, %7 : vector<104x128xf32>
    %c0_i32 = arith.constant 0 : i32
    %9 = arith.cmpi eq, %arg1, %c0_i32 : i32
    %10 = arith.extui %9 : i1 to i32
    %c0_i32_7 = arith.constant 0 : i32
    %11 = arith.cmpi ne, %10, %c0_i32_7 : i32
    scf.if %11 {
      %c0_10 = arith.constant 0 : index
      %c0_11 = arith.constant 0 : index
      %15 = vector.load %arg5[%c0_10, %c0_11] : memref<104x128xf32, #tpu.memory_space<vmem>>, vector<104x128xf32>
      tpu.vector_store %arg5[%c0_10, %c0_11], %8 {strides = array<i32>} : memref<104x128xf32, #tpu.memory_space<vmem>>, vector<104x128xf32>,
    } else {
    }
    %c0_i32_8 = arith.constant 0 : i32
    %12 = arith.cmpi sgt, %arg1, %c0_i32_8 : i32
    %13 = arith.extui %12 : i1 to i32
    %c0_i32_9 = arith.constant 0 : i32
    %14 = arith.cmpi ne, %13, %c0_i32_9 : i32
    scf.if %14 {
      %c0_10 = arith.constant 0 : index
      %c0_11 = arith.constant 0 : index
      %15 = vector.load %arg5[%c0_10, %c0_11] : memref<104x128xf32, #tpu.memory_space<vmem>>, vector<104x128xf32>
      %16 = arith.maximumf %15, %8 : vector<104x128xf32>
      %c0_12 = arith.constant 0 : index
      %c0_13 = arith.constant 0 : index
      %17 = vector.load %arg5[%c0_12, %c0_13] : memref<104x128xf32, #tpu.memory_space<vmem>>, vector<104x128xf32>
      tpu.vector_store %arg5[%c0_12, %c0_13], %16 {strides = array<i32>} : memref<104x128xf32, #tpu.memory_space<vmem>>, vector<104x128xf32>,
    } else {
    }
    return
  }
  func.func @transform_0(%arg0: i32, %arg1: i32) -> (i32, i32, i32) {
    %c0_i32 = arith.constant 0 : i32
    %c0_i32_0 = arith.constant 0 : i32
    return %arg1, %arg0, %c0_i32 : i32, i32, i32
  }
  func.func @transform_1(%arg0: i32, %arg1: i32) -> (i32, i32) {
    %c0_i32 = arith.constant 0 : i32
    %c0_i32_0 = arith.constant 0 : i32
    %c0_i32_1 = arith.constant 0 : i32
    return %c0_i32, %c0_i32_0 : i32, i32
  }
  func.func @transform_2(%arg0: i32, %arg1: i32) -> (i32, i32) {
    %c0_i32 = arith.constant 0 : i32
    %c0_i32_0 = arith.constant 0 : i32
    %c0_i32_1 = arith.constant 0 : i32
    return %c0_i32, %c0_i32_0 : i32, i32
  }
  func.func @transform_3(%arg0: i32, %arg1: i32) -> (i32, i32) {
    %c0_i32 = arith.constant 0 : i32
    %c0_i32_0 = arith.constant 0 : i32
    return %arg0, %c0_i32 : i32, i32
  }
}

</mosaic_0001>

<llo_original>
// kernel: alexnet_conv1_pallas.1
$region0: #{alexnet_conv1_pallas.1}
  #allocation0 [shape = 'u32[]', space=smem, size = 0x4, offset = 0x4, fixed_abs, tag = 'smem constant byte address 0x4 - core index']
  #allocation1 [shape = 'u32[72,128]{1,0:T(1,128)}', space=vmem, size = 0x9000, scoped, tag = 'internal scratch']
  %s0 = inlined_call_operand.vmem [shape: bf16[4,104,384], index: 0, kind: input, shape index: {}]
  %s1 = inlined_call_operand.vmem [shape: bf16[384,128], index: 1, kind: input, shape index: {}]
  %s2 = inlined_call_operand.vmem [shape: f32[1,128], index: 2, kind: input, shape index: {}]
  %s3 = inlined_call_operand.vmem [shape: f32[104,128], index: 3, kind: output, shape index: {}]
  %s4 = sld [smem:[#allocation0]]
  $region53: #{alexnet_conv1_pallas.1} parent=0
    _
  %s6 = ssub.s32 1, %s4
  %s7 = scalar_select 0, %s6, %s4
  loop: start=0, step=1, limit=6
  $region2: #{alexnet_conv1_pallas.1} parent=0 // loop_pre_header
    _
  $region3: #{alexnet_conv1_pallas.1} parent=0 // loop_header
    %s9 = sphi 0, %s13
    %p10 = scmp.ge.s32.totalorder %s9, 6
    %s16 = sphi 0, %s28
    %s17 = sphi 0, %s24
    %s18 = sphi 0, %s16
    %s19 = sphi 0, %s17
    %s20 = sphi 0, %s18
    %s21 = sphi 0, %s19
    %s33 = sphi 0, %s35
    %s36 = sphi 0, %s33
    %s37 = sphi 0, %s36
    %s53 = sphi 0, %s37
    %s57 = sphi 0, %s57
    %s59 = sphi 0, %s57
    %s60 = sphi 0, %s59
    %s74 = sphi 0, %s60
    %s78 = sphi 0, %s78
    %s80 = sphi 0, %s78
    %s81 = sphi 0, %s80
    %s95 = sphi 0, %s81
    %s101 = sphi 0, %s103
    %s104 = sphi 0, %s101
    %s105 = sphi 0, %s104
    %s121 = sphi 0, %s105
  $region4: #{alexnet_conv1_pallas.1} parent=0 // loop_header_branch
    %12 = sbr.rel (%p10) target = $region8
  $region5: #{alexnet_conv1_pallas.1} parent=0 // loop_body
    %s14 = ssub.s32 %s9, 1
    %s15 = ssub.s32 %s9, 2
    %s22 = sadd.s32 1, %s17
    %p23 = scmp.ge.s32.totalorder %s22, 4
    %s24 = scalar_select %p23, 0, %s22
    %s25 = sadd.s32 1, %s16
    %s26 = scalar_select %p23, %s25, %s16
    %p27 = scmp.ge.s32.totalorder %s26, 1
    %s28 = scalar_select %p27, 0, %s26
    %s29 = ssub.s32 %s17, %s24
    %s30 = ssub.s32 %s16, %s28
    %s31 = sor.u32 %s29, %s30
    %p32 = scmp.eq.s32.totalorder %s31, 0
    %s34 = sadd.s32 %s33, 1
    %s35 = scalar_select %p32, %s33, %s34
    %p38 = pneg %p32
    %p39 = scmp.eq.s32.totalorder %s9, 3
    %p40 = por %p38, %p39
    %p41 = scmp.ne.s32.totalorder %s33, %s36
    %p42 = scmp.eq.s32.totalorder %s9, 0
    %p43 = por %p41, %p42
    %p44 = scmp.ne.s32.totalorder %s33, %s36
    %p45 = scmp.eq.s32.totalorder %s14, 3
    %p46 = por %p44, %p45
    %p47 = scmp.ne.s32.totalorder %s36, %s37
    %p48 = scmp.eq.s32.totalorder %s14, 0
    %p49 = por %p47, %p48
    %p50 = scmp.ne.s32.totalorder %s36, %s37
    %p51 = scmp.eq.s32.totalorder %s15, 3
    %p52 = por %p50, %p51
    %p54 = scmp.ne.s32.totalorder %s37, %s53
    %p55 = scmp.eq.s32.totalorder %s15, 0
    %p56 = por %p54, %p55
    %s58 = sadd.s32 %s57, 1
    %p61 = scmp.eq.s32.totalorder %s9, 3
    %p62 = scmp.ne.s32.totalorder %s57, %s59
    %p63 = scmp.eq.s32.totalorder %s9, 0
    %p64 = por %p62, %p63
    %p65 = scmp.ne.s32.totalorder %s57, %s59
    %p66 = scmp.eq.s32.totalorder %s14, 3
    %p67 = por %p65, %p66
    %p68 = scmp.ne.s32.totalorder %s59, %s60
    %p69 = scmp.eq.s32.totalorder %s14, 0
    %p70 = por %p68, %p69
    %p71 = scmp.ne.s32.totalorder %s59, %s60
    %p72 = scmp.eq.s32.totalorder %s15, 3
    %p73 = por %p71, %p72
    %p75 = scmp.ne.s32.totalorder %s60, %s74
    %p76 = scmp.eq.s32.totalorder %s15, 0
    %p77 = por %p75, %p76
    %s79 = sadd.s32 %s78, 1
    %p82 = scmp.eq.s32.totalorder %s9, 3
    %p83 = scmp.ne.s32.totalorder %s78, %s80
    %p84 = scmp.eq.s32.totalorder %s9, 0
    %p85 = por %p83, %p84
    %p86 = scmp.ne.s32.totalorder %s78, %s80
    %p87 = scmp.eq.s32.totalorder %s14, 3
    %p88 = por %p86, %p87
    %p89 = scmp.ne.s32.totalorder %s80, %s81
    %p90 = scmp.eq.s32.totalorder %s14, 0
    %p91 = por %p89, %p90
    %p92 = scmp.ne.s32.totalorder %s80, %s81
    %p93 = scmp.eq.s32.totalorder %s15, 3
    %p94 = por %p92, %p93
    %p96 = scmp.ne.s32.totalorder %s81, %s95
    %p97 = scmp.eq.s32.totalorder %s15, 0
    %p98 = por %p96, %p97
    %s99 = ssub.s32 %s16, %s28
    %p100 = scmp.eq.s32.totalorder %s99, 0
    %s102 = sadd.s32 %s101, 1
    %s103 = scalar_select %p100, %s101, %s102
    %p106 = pneg %p100
    %p107 = scmp.eq.s32.totalorder %s9, 3
    %p108 = por %p106, %p107
    %p109 = scmp.ne.s32.totalorder %s101, %s104
    %p110 = scmp.eq.s32.totalorder %s9, 0
    %p111 = por %p109, %p110
    %p112 = scmp.ne.s32.totalorder %s101, %s104
    %p113 = scmp.eq.s32.totalorder %s14, 3
    %p114 = por %p112, %p113
    %p115 = scmp.ne.s32.totalorder %s104, %s105
    %p116 = scmp.eq.s32.totalorder %s14, 0
    %p117 = por %p115, %p116
    %p118 = scmp.ne.s32.totalorder %s104, %s105
    %p119 = scmp.eq.s32.totalorder %s15, 3
    %p120 = por %p118, %p119
    %p122 = scmp.ne.s32.totalorder %s105, %s121
    %p123 = scmp.eq.s32.totalorder %s15, 0
    %p124 = por %p122, %p123
    %p125 = scmp.le.s32.totalorder 1, %s9
    %p126 = scmp.lt.s32.totalorder %s9, 5
    %p127 = pnand %p125, %p126
    %p128 = pneg %p127
    // Predicated region
    $region9: #{alexnet_conv1_pallas.1} parent=5 // pred_check
      _
    $region10: #{alexnet_conv1_pallas.1} parent=5 // pred_check_branch
      %130 = sbr.rel (%p127) target = $region12
    $region11: #{alexnet_conv1_pallas.1} parent=5 // pred_region
      %s131 = ssub.s32 %s9, 1
      // Predicated region
      $region13: #{alexnet_conv1_pallas.1} parent=11 // pred_check
        %p132 = pneg %p70
      $region14: #{alexnet_conv1_pallas.1} parent=11 // pred_check_branch
        %134 = sbr.rel (%p132) target = $region16
      $region15: #{alexnet_conv1_pallas.1} parent=11 // pred_region
        _
      $region16: #{alexnet_conv1_pallas.1} parent=11 // pred_fallthru
        _
      // Predicated region
      $region17: #{alexnet_conv1_pallas.1} parent=11 // pred_check
        %p135 = pneg %p91
      $region18: #{alexnet_conv1_pallas.1} parent=11 // pred_check_branch
        %137 = sbr.rel (%p135) target = $region20
      $region19: #{alexnet_conv1_pallas.1} parent=11 // pred_region
        _
      $region20: #{alexnet_conv1_pallas.1} parent=11 // pred_fallthru
        _
    $region12: #{alexnet_conv1_pallas.1} parent=5 // pred_fallthru
      _
    %p138 = scmp.lt.s32.totalorder %s9, 4
    // Predicated region
    $region21: #{alexnet_conv1_pallas.1} parent=5 // pred_check
      %p139 = pneg %p138
    $region22: #{alexnet_conv1_pallas.1} parent=5 // pred_check_branch
      %141 = sbr.rel (%p139) target = $region24
    $region23: #{alexnet_conv1_pallas.1} parent=5 // pred_region
      // Predicated region
      $region25: #{alexnet_conv1_pallas.1} parent=23 // pred_check
        %p142 = pneg %p43
      $region26: #{alexnet_conv1_pallas.1} parent=23 // pred_check_branch
        %144 = sbr.rel (%p142) target = $region28
      $region27: #{alexnet_conv1_pallas.1} parent=23 // pred_region
        %s145 = smul.u32 13, %s16
        %p146 = scmp.lt.s32.totalorder %s17, 3
        %s147 = scalar_select %p146, %s17, 3
        %p148 = scmp.lt.s32.totalorder %s145, 12
        %s149 = scalar_select %p148, %s145, 12
        %s150 = smul.addr %s149, 3
        %s151 = smul.addr %s147, 39
        %s152 = sadd.s32 %s150, %s151
        %s153 = smul.addr %s152, 4
        %s154 = scalar_lea.vmem %s0, %s153
        %s155 = smul.u32 13, %s16
      $region28: #{alexnet_conv1_pallas.1} parent=23 // pred_fallthru
        _
    $region24: #{alexnet_conv1_pallas.1} parent=5 // pred_fallthru
      _
    %p156 = scmp.le.s32.totalorder 1, %s9
    %p157 = scmp.lt.s32.totalorder %s9, 5
    %p158 = pnand %p156, %p157
    %p159 = pneg %p158
    // Predicated region
    $region29: #{alexnet_conv1_pallas.1} parent=5 // pred_check
      _
    $region30: #{alexnet_conv1_pallas.1} parent=5 // pred_check_branch
      %161 = sbr.rel (%p158) target = $region32
    $region31: #{alexnet_conv1_pallas.1} parent=5 // pred_region
      %s162 = ssub.s32 %s9, 1
      %s163 = smul.u32 13, %s18
      %p164 = scmp.lt.s32.totalorder %s19, 3
      %s165 = scalar_select %p164, %s19, 3
      %p166 = scmp.lt.s32.totalorder %s163, 12
      %s167 = scalar_select %p166, %s163, 12
      %s168 = smul.addr %s167, 3
      %s169 = smul.addr %s165, 39
      %s170 = sadd.s32 %s168, %s169
      %s171 = smul.addr %s170, 4
      %s172 = scalar_lea.vmem %s0, %s171
      %p173 = pneg %p49
      %p174 = pneg %p46
      %p175 = pneg %p70
      %p176 = pneg %p67
      %p177 = pneg %p91
      %p178 = pneg %p88
      %p179 = pneg %p117
      %p180 = pneg %p114
      %s181 = smul.u32 13, %s18
      %p182 = scmp.lt.s32.totalorder %s181, 12
      %s183 = scalar_select %p182, %s181, 12
      %s184 = smul.addr %s183, 8
      %s185 = scalar_lea.vmem %s3, %s184
      %s186 = smul.u32 13, %s18
      %p187 = scmp.lt.s32.totalorder %s19, 3
      %s188 = scalar_select %p187, %s19, 3
      %p189 = scmp.lt.s32.totalorder %s186, 12
      %s190 = scalar_select %p189, %s186, 12
      %s191 = smul.addr %s190, 3
      %s192 = smul.addr %s188, 39
      %s193 = sadd.s32 %s191, %s192
      %s194 = smul.addr %s193, 4
      %s195 = scalar_lea.vmem %s0, %s194
      %s196 = smul.u32 13, %s18
      %s197 = smul.u32 13, %s18
      %p198 = scmp.lt.s32.totalorder %s197, 12
      %s199 = scalar_select %p198, %s197, 12
      %s200 = smul.addr %s199, 8
      %s201 = scalar_lea.vmem %s3, %s200
      %s202 = smul.u32 13, %s18
      %v203 = vld [vmem:[%s195] sm:$0xff]
      %v204 = vld [vmem:[%s195 + $0x8] sm:$0xf]
      %v205 = vld [vmem:[%s195 + $0xc] sm:$0xff]
      %v206 = vld [vmem:[%s195 + $0x14] sm:$0xf]
      %v207 = vld [vmem:[%s195 + $0x18] sm:$0xff]
      %v208 = vld [vmem:[%s195 + $0x20] sm:$0xf]
      %v209 = vld [vmem:[%s195 + $0x24] sm:$0xff]
      %v210 = vld [vmem:[%s195 + $0x2c] sm:$0xf]
      %v211 = vld [vmem:[%s195 + $0x30] sm:$0xff]
      %v212 = vld [vmem:[%s195 + $0x38] sm:$0xf]
      %v213 = vld [vmem:[%s195 + $0x3c] sm:$0xff]
      %v214 = vld [vmem:[%s195 + $0x44] sm:$0xf]
      %v215 = vld [vmem:[%s195 + $0x48] sm:$0xff]
      %v216 = vld [vmem:[%s195 + $0x50] sm:$0xf]
      %v217 = vld [vmem:[%s195 + $0x54] sm:$0xff]
      %v218 = vld [vmem:[%s195 + $0x5c] sm:$0xf]
      %v219 = vld [vmem:[%s195 + $0x60] sm:$0xff]
      %v220 = vld [vmem:[%s195 + $0x68] sm:$0xf]
      %v221 = vld [vmem:[%s195 + $0x6c] sm:$0xff]
      %v222 = vld [vmem:[%s195 + $0x74] sm:$0xf]
      %v223 = vld [vmem:[%s195 + $0x78] sm:$0xff]
      %v224 = vld [vmem:[%s195 + $0x80] sm:$0xf]
      %v225 = vld [vmem:[%s195 + $0x84] sm:$0xff]
      %v226 = vld [vmem:[%s195 + $0x8c] sm:$0xf]
      %v227 = vld [vmem:[%s195 + $0x90] sm:$0xff]
      %v228 = vld [vmem:[%s195 + $0x98] sm:$0xf]
      %v229 = vld [vmem:[%s1] sm:$0xf]
      %v230 = vld [vmem:[%s1 + $0x4] sm:$0xf]
      %v231 = vld [vmem:[%s1 + $0x8] sm:$0xf]
      %v232 = vld [vmem:[%s1 + $0xc] sm:$0xf]
      %v233 = vld [vmem:[%s1 + $0x10] sm:$0xf]
      %v234 = vld [vmem:[%s1 + $0x14] sm:$0xf]
      %v235 = vld [vmem:[%s1 + $0x18] sm:$0xf]
      %v236 = vld [vmem:[%s1 + $0x1c] sm:$0xf]
      %v237 = vld [vmem:[%s1 + $0x20] sm:$0xf]
      %v238 = vld [vmem:[%s1 + $0x24] sm:$0xf]
      %v239 = vld [vmem:[%s1 + $0x28] sm:$0xf]
      %v240 = vld [vmem:[%s1 + $0x2c] sm:$0xf]
      %v241 = vld [vmem:[%s1 + $0x30] sm:$0xf]
      %v242 = vld [vmem:[%s1 + $0x34] sm:$0xf]
      %v243 = vld [vmem:[%s1 + $0x38] sm:$0xf]
      %v244 = vld [vmem:[%s1 + $0x3c] sm:$0xf]
      %v245 = vld [vmem:[%s1 + $0x40] sm:$0xf]
      %v246 = vld [vmem:[%s1 + $0x44] sm:$0xf]
      %v247 = vld [vmem:[%s1 + $0x48] sm:$0xf]
      %v248 = vld [vmem:[%s1 + $0x4c] sm:$0xf]
      %v249 = vld [vmem:[%s1 + $0x50] sm:$0xf]
      %v250 = vld [vmem:[%s1 + $0x54] sm:$0xf]
      %v251 = vld [vmem:[%s1 + $0x58] sm:$0xf]
      %v252 = vld [vmem:[%s1 + $0x5c] sm:$0xf]
      %v253 = vld [vmem:[%s1 + $0x60] sm:$0xf]
      %v254 = vld [vmem:[%s1 + $0x64] sm:$0xf]
      %v255 = vld [vmem:[%s1 + $0x68] sm:$0xf]
      %v256 = vld [vmem:[%s1 + $0x6c] sm:$0xf]
      %v257 = vld [vmem:[%s1 + $0x70] sm:$0xf]
      %v258 = vld [vmem:[%s1 + $0x74] sm:$0xf]
      %v259 = vld [vmem:[%s1 + $0x78] sm:$0xf]
      %v260 = vld [vmem:[%s1 + $0x7c] sm:$0xf]
      %v261 = vld [vmem:[%s1 + $0x80] sm:$0xf]
      %v262 = vld [vmem:[%s1 + $0x84] sm:$0xf]
      %v263 = vld [vmem:[%s1 + $0x88] sm:$0xf]
      %v264 = vld [vmem:[%s1 + $0x8c] sm:$0xf]
      %v265 = vld [vmem:[%s1 + $0x90] sm:$0xf]
      %v266 = vld [vmem:[%s1 + $0x94] sm:$0xf]
      %v267 = vld [vmem:[%s1 + $0x98] sm:$0xf]
      %v268 = vld [vmem:[%s1 + $0x9c] sm:$0xf]
      %v269 = vld [vmem:[%s1 + $0xa0] sm:$0xf]
      %v270 = vld [vmem:[%s1 + $0xa4] sm:$0xf]
      %v271 = vld [vmem:[%s1 + $0xa8] sm:$0xf]
      %v272 = vld [vmem:[%s1 + $0xac] sm:$0xf]
      %v273 = vld [vmem:[%s1 + $0xb0] sm:$0xf]
      %v274 = vld [vmem:[%s1 + $0xb4] sm:$0xf]
      %v275 = vld [vmem:[%s1 + $0xb8] sm:$0xf]
      %v276 = vld [vmem:[%s1 + $0xbc] sm:$0xf]
      %v277 = vld [vmem:[%s2] sm:$0x1]
      %v279 = vperm.slane %v277, 0
      %v307 = vunpack.c.l.b16 %v203
      %v308 = vunpack.c.h.b16 %v203
      %v309 = vunpack.c.l.b16 %v204
      %v310 = vunpack.c.l.b16 %v205
      %v311 = vunpack.c.h.b16 %v205
      %v312 = vunpack.c.l.b16 %v206
      %v313 = vunpack.c.l.b16 %v207
      %v314 = vunpack.c.h.b16 %v207
      %v315 = vunpack.c.l.b16 %v208
      %v316 = vunpack.c.l.b16 %v209
      %v317 = vunpack.c.h.b16 %v209
      %v318 = vunpack.c.l.b16 %v210
      %v319 = vunpack.c.l.b16 %v211
      %v320 = vunpack.c.h.b16 %v211
      %v321 = vunpack.c.l.b16 %v212
      %v322 = vunpack.c.l.b16 %v213
      %v323 = vunpack.c.h.b16 %v213
      %v324 = vunpack.c.l.b16 %v214
      %v325 = vunpack.c.l.b16 %v215
      %v326 = vunpack.c.h.b16 %v215
      %v327 = vunpack.c.l.b16 %v216
      %v328 = vunpack.c.l.b16 %v217
      %v329 = vunpack.c.h.b16 %v217
      %v330 = vunpack.c.l.b16 %v218
      %v331 = vunpack.c.l.b16 %v219
      %v332 = vunpack.c.h.b16 %v219
      %v333 = vunpack.c.l.b16 %v220
      %v334 = vunpack.c.l.b16 %v221
      %v335 = vunpack.c.h.b16 %v221
      %v336 = vunpack.c.l.b16 %v222
      %v337 = vunpack.c.l.b16 %v223
      %v338 = vunpack.c.h.b16 %v223
      %v339 = vunpack.c.l.b16 %v224
      %v340 = vunpack.c.l.b16 %v225
      %v341 = vunpack.c.h.b16 %v225
      %v342 = vunpack.c.l.b16 %v226
      %v343 = vunpack.c.l.b16 %v227
      %v344 = vunpack.c.h.b16 %v227
      %v345 = vunpack.c.l.b16 %v228
      %v346 = vpack.c.b16 %v310, %v307
      %v347 = vpack.c.b16 %v311, %v308
      %v348 = vpack.c.b16 %v312, %v309
      %v349 = vpack.c.b16 %v316, %v313
      %v350 = vpack.c.b16 %v317, %v314
      %v351 = vpack.c.b16 %v318, %v315
      %v352 = vpack.c.b16 %v322, %v319
      %v353 = vpack.c.b16 %v323, %v320
      %v354 = vpack.c.b16 %v324, %v321
      %v355 = vpack.c.b16 %v328, %v325
      %v356 = vpack.c.b16 %v329, %v326
      %v357 = vpack.c.b16 %v330, %v327
      %v358 = vpack.c.b16 %v334, %v331
      %v359 = vpack.c.b16 %v335, %v332
      %v360 = vpack.c.b16 %v336, %v333
      %v361 = vpack.c.b16 %v340, %v337
      %v362 = vpack.c.b16 %v341, %v338
      %v363 = vpack.c.b16 %v342, %v339
      %v364 = vpack.c.b16 %v343, %v343
      %v365 = vpack.c.b16 %v344, %v344
      %v366 = vpack.c.b16 %v345, %v345
      %v436 = vunpack.c.l.b16 %v229
      %v437 = vunpack.c.l.b16 %v230
      %v438 = vunpack.c.l.b16 %v231
      %v439 = vunpack.c.l.b16 %v232
      %v440 = vunpack.c.l.b16 %v233
      %v441 = vunpack.c.l.b16 %v234
      %v442 = vunpack.c.l.b16 %v235
      %v443 = vunpack.c.l.b16 %v236
      %v444 = vunpack.c.l.b16 %v237
      %v445 = vunpack.c.l.b16 %v238
      %v446 = vunpack.c.l.b16 %v239
      %v447 = vunpack.c.l.b16 %v240
      %v448 = vunpack.c.l.b16 %v241
      %v449 = vunpack.c.l.b16 %v242
      %v450 = vunpack.c.l.b16 %v243
      %v451 = vunpack.c.l.b16 %v244
      %v452 = vunpack.c.l.b16 %v245
      %v453 = vunpack.c.l.b16 %v246
      %v454 = vunpack.c.l.b16 %v247
      %v455 = vunpack.c.l.b16 %v248
      %v456 = vunpack.c.l.b16 %v249
      %v457 = vunpack.c.l.b16 %v250
      %v458 = vunpack.c.l.b16 %v251
      %v459 = vunpack.c.l.b16 %v252
      %v460 = vunpack.c.l.b16 %v253
      %v461 = vunpack.c.l.b16 %v254
      %v462 = vunpack.c.l.b16 %v255
      %v463 = vunpack.c.l.b16 %v256
      %v464 = vunpack.c.l.b16 %v257
      %v465 = vunpack.c.l.b16 %v258
      %v466 = vunpack.c.l.b16 %v259
      %v467 = vunpack.c.l.b16 %v260
      %v468 = vunpack.c.l.b16 %v261
      %v469 = vunpack.c.l.b16 %v262
      %v470 = vunpack.c.l.b16 %v263
      %v471 = vunpack.c.l.b16 %v264
      %v472 = vunpack.c.l.b16 %v265
      %v473 = vunpack.c.l.b16 %v266
      %v474 = vunpack.c.l.b16 %v267
      %v475 = vunpack.c.l.b16 %v268
      %v476 = vunpack.c.l.b16 %v269
      %v477 = vunpack.c.l.b16 %v270
      %v478 = vunpack.c.l.b16 %v271
      %v479 = vunpack.c.l.b16 %v272
      %v480 = vunpack.c.l.b16 %v273
      %v481 = vunpack.c.l.b16 %v274
      %v482 = vunpack.c.l.b16 %v275
      %v483 = vunpack.c.l.b16 %v276
      %v484 = vpack.c.b16 %v437, %v436
      %v485 = vpack.c.b16 %v439, %v438
      %v486 = vpack.c.b16 %v441, %v440
      %v487 = vpack.c.b16 %v443, %v442
      %v488 = vpack.c.b16 %v445, %v444
      %v489 = vpack.c.b16 %v447, %v446
      %v490 = vpack.c.b16 %v449, %v448
      %v491 = vpack.c.b16 %v451, %v450
      %v492 = vpack.c.b16 %v453, %v452
      %v493 = vpack.c.b16 %v455, %v454
      %v494 = vpack.c.b16 %v457, %v456
      %v495 = vpack.c.b16 %v459, %v458
      %v496 = vpack.c.b16 %v461, %v460
      %v497 = vpack.c.b16 %v463, %v462
      %v498 = vpack.c.b16 %v465, %v464
      %v499 = vpack.c.b16 %v467, %v466
      %v500 = vpack.c.b16 %v469, %v468
      %v501 = vpack.c.b16 %v471, %v470
      %v502 = vpack.c.b16 %v473, %v472
      %v503 = vpack.c.b16 %v475, %v474
      %v504 = vpack.c.b16 %v477, %v476
      %v505 = vpack.c.b16 %v479, %v478
      %v506 = vpack.c.b16 %v481, %v480
      %v507 = vpack.c.b16 %v483, %v482
      %532 = vmatpush.bf16.msra.mxu0 %v491
      %533 = vmatpush.bf16.msra.mxu0 %v490
      %534 = vmatpush.bf16.msra.mxu0 %v489
      %535 = vmatpush.bf16.msra.mxu0 %v488
      %536 = vmatpush.bf16.msra.mxu0 %v487
      %537 = vmatpush.bf16.msra.mxu0 %v486
      %538 = vmatpush.bf16.msra.mxu0 %v485
      %539 = vmatpush.bf16.msra.mxu0 %v484
      %540 = vmatmul.bf16.gmra.mxu0 %v346
      %v541 = vpop.f32.mrf.mxu0
      %v542 = vadd.f32 %v279, %v541
      %v543 = vpop.f32.mrf.mxu0
      %v544 = vadd.f32 %v279, %v543
      %545 = vmatmul.bf16.gmra.mxu0 %v349
      %v546 = vpop.f32.mrf.mxu0
      %v547 = vadd.f32 %v279, %v546
      %v548 = vpop.f32.mrf.mxu0
      %v549 = vadd.f32 %v279, %v548
      %550 = vmatmul.bf16.gmra.mxu0 %v352
      %v551 = vpop.f32.mrf.mxu0
      %v552 = vadd.f32 %v279, %v551
      %v553 = vpop.f32.mrf.mxu0
      %v554 = vadd.f32 %v279, %v553
      %555 = vmatmul.bf16.gmra.mxu0 %v355
      %v556 = vpop.f32.mrf.mxu0
      %v557 = vadd.f32 %v279, %v556
      %v558 = vpop.f32.mrf.mxu0
      %v559 = vadd.f32 %v279, %v558
      %560 = vmatmul.bf16.gmra.mxu0 %v358
      %v561 = vpop.f32.mrf.mxu0
      %v562 = vadd.f32 %v279, %v561
      %v563 = vpop.f32.mrf.mxu0
      %v564 = vadd.f32 %v279, %v563
      %565 = vmatmul.bf16.gmra.mxu0 %v361
      %v566 = vpop.f32.mrf.mxu0
      %v567 = vadd.f32 %v279, %v566
      %v568 = vpop.f32.mrf.mxu0
      %v569 = vadd.f32 %v279, %v568
      %570 = vmatmul.bf16.gmra.mxu0 %v364
      %v571 = vpop.f32.mrf.mxu0
      %v572 = vadd.f32 %v279, %v571
      %v573 = vpop.f32.mrf.mxu0
      %574 = vdwg.mxu0
      %575 = vmatpush.bf16.msra.mxu0 %v499
      %576 = vmatpush.bf16.msra.mxu0 %v498
      %577 = vmatpush.bf16.msra.mxu0 %v497
      %578 = vmatpush.bf16.msra.mxu0 %v496
      %579 = vmatpush.bf16.msra.mxu0 %v495
      %580 = vmatpush.bf16.msra.mxu0 %v494
      %581 = vmatpush.bf16.msra.mxu0 %v493
      %582 = vmatpush.bf16.msra.mxu0 %v492
      %583 = vmatmul.bf16.gmra.mxu0 %v347
      %v584 = vpop.f32.mrf.mxu0
      %v585 = vadd.f32 %v542, %v584
      %v586 = vpop.f32.mrf.mxu0
      %v587 = vadd.f32 %v544, %v586
      %588 = vmatmul.bf16.gmra.mxu0 %v350
      %v589 = vpop.f32.mrf.mxu0
      %v590 = vadd.f32 %v547, %v589
      %v591 = vpop.f32.mrf.mxu0
      %v592 = vadd.f32 %v549, %v591
      %593 = vmatmul.bf16.gmra.mxu0 %v353
      %v594 = vpop.f32.mrf.mxu0
      %v595 = vadd.f32 %v552, %v594
      %v596 = vpop.f32.mrf.mxu0
      %v597 = vadd.f32 %v554, %v596
      %598 = vmatmul.bf16.gmra.mxu0 %v356
      %v599 = vpop.f32.mrf.mxu0
      %v600 = vadd.f32 %v557, %v599
      %v601 = vpop.f32.mrf.mxu0
      %v602 = vadd.f32 %v559, %v601
      %603 = vmatmul.bf16.gmra.mxu0 %v359
      %v604 = vpop.f32.mrf.mxu0
      %v605 = vadd.f32 %v562, %v604
      %v606 = vpop.f32.mrf.mxu0
      %v607 = vadd.f32 %v564, %v606
      %608 = vmatmul.bf16.gmra.mxu0 %v362
      %v609 = vpop.f32.mrf.mxu0
      %v610 = vadd.f32 %v567, %v609
      %v611 = vpop.f32.mrf.mxu0
      %v612 = vadd.f32 %v569, %v611
      %613 = vmatmul.bf16.gmra.mxu0 %v365
      %v614 = vpop.f32.mrf.mxu0
      %v615 = vadd.f32 %v572, %v614
      %v616 = vpop.f32.mrf.mxu0
      %617 = vdwg.mxu0
      %618 = vmatpush.bf16.msra.mxu0 %v507
      %619 = vmatpush.bf16.msra.mxu0 %v506
      %620 = vmatpush.bf16.msra.mxu0 %v505
      %621 = vmatpush.bf16.msra.mxu0 %v504
      %622 = vmatpush.bf16.msra.mxu0 %v503
      %623 = vmatpush.bf16.msra.mxu0 %v502
      %624 = vmatpush.bf16.msra.mxu0 %v501
      %625 = vmatpush.bf16.msra.mxu0 %v500
      %626 = vmatmul.bf16.gmra.mxu0 %v348
      %v627 = vpop.f32.mrf.mxu0
      %v628 = vadd.f32 %v585, %v627
      %v629 = vpop.f32.mrf.mxu0
      %v630 = vadd.f32 %v587, %v629
      %631 = vmatmul.bf16.gmra.mxu0 %v351
      %v632 = vpop.f32.mrf.mxu0
      %v633 = vadd.f32 %v590, %v632
      %v634 = vpop.f32.mrf.mxu0
      %v635 = vadd.f32 %v592, %v634
      %636 = vmatmul.bf16.gmra.mxu0 %v354
      %v637 = vpop.f32.mrf.mxu0
      %v638 = vadd.f32 %v595, %v637
      %v639 = vpop.f32.mrf.mxu0
      %v640 = vadd.f32 %v597, %v639
      %641 = vmatmul.bf16.gmra.mxu0 %v357
      %v642 = vpop.f32.mrf.mxu0
      %v643 = vadd.f32 %v600, %v642
      %v644 = vpop.f32.mrf.mxu0
      %v645 = vadd.f32 %v602, %v644
      %646 = vmatmul.bf16.gmra.mxu0 %v360
      %v647 = vpop.f32.mrf.mxu0
      %v648 = vadd.f32 %v605, %v647
      %v649 = vpop.f32.mrf.mxu0
      %v650 = vadd.f32 %v607, %v649
      %651 = vmatmul.bf16.gmra.mxu0 %v363
      %v652 = vpop.f32.mrf.mxu0
      %v653 = vadd.f32 %v610, %v652
      %v654 = vpop.f32.mrf.mxu0
      %v655 = vadd.f32 %v612, %v654
      %656 = vmatmul.bf16.gmra.mxu0 %v366
      %v657 = vpop.f32.mrf.mxu0
      %v658 = vadd.f32 %v615, %v657
      %v659 = vpop.f32.mrf.mxu0
      %660 = vdwg.mxu0
      %v661 = vmax.f32 %v628, 0.0
      %v662 = vmax.f32 %v630, 0.0
      %v663 = vmax.f32 %v633, 0.0
      %v664 = vmax.f32 %v635, 0.0
      %v665 = vmax.f32 %v638, 0.0
      %v666 = vmax.f32 %v640, 0.0
      %v667 = vmax.f32 %v643, 0.0
      %v668 = vmax.f32 %v645, 0.0
      %v669 = vmax.f32 %v648, 0.0
      %v670 = vmax.f32 %v650, 0.0
      %v671 = vmax.f32 %v653, 0.0
      %v672 = vmax.f32 %v655, 0.0
      %v673 = vmax.f32 %v658, 0.0
      %p674 = scmp.eq.s32.totalorder %s19, 0
      // Predicated region
      $region33: #{alexnet_conv1_pallas.1} parent=31 // pred_check
        %p675 = pneg %p674
      $region34: #{alexnet_conv1_pallas.1} parent=31 // pred_check_branch
        %677 = sbr.rel (%p675) target = $region36
      $region35: #{alexnet_conv1_pallas.1} parent=31 // pred_region
        %678 = vst [vmem:[%s201] sm:$0xff] %v661
        %679 = vst [vmem:[%s201 + $0x8] sm:$0xff] %v662
        %680 = vst [vmem:[%s201 + $0x10] sm:$0xff] %v663
        %681 = vst [vmem:[%s201 + $0x18] sm:$0xff] %v664
        %682 = vst [vmem:[%s201 + $0x20] sm:$0xff] %v665
        %683 = vst [vmem:[%s201 + $0x28] sm:$0xff] %v666
        %684 = vst [vmem:[%s201 + $0x30] sm:$0xff] %v667
        %685 = vst [vmem:[%s201 + $0x38] sm:$0xff] %v668
        %686 = vst [vmem:[%s201 + $0x40] sm:$0xff] %v669
        %687 = vst [vmem:[%s201 + $0x48] sm:$0xff] %v670
        %688 = vst [vmem:[%s201 + $0x50] sm:$0xff] %v671
        %689 = vst [vmem:[%s201 + $0x58] sm:$0xff] %v672
        %690 = vst [vmem:[%s201 + $0x60] sm:$0xff] %v673
      $region36: #{alexnet_conv1_pallas.1} parent=31 // pred_fallthru
        _
      %p691 = scmp.gt.s32.totalorder %s19, 0
      // Predicated region
      $region37: #{alexnet_conv1_pallas.1} parent=31 // pred_check
        %p692 = pneg %p691
      $region38: #{alexnet_conv1_pallas.1} parent=31 // pred_check_branch
        %694 = sbr.rel (%p692) target = $region40
      $region39: #{alexnet_conv1_pallas.1} parent=31 // pred_region
        %v695 = vld [vmem:[%s201] sm:$0xff]
        %v696 = vld [vmem:[%s201 + $0x8] sm:$0xff]
        %v697 = vld [vmem:[%s201 + $0x10] sm:$0xff]
        %v698 = vld [vmem:[%s201 + $0x18] sm:$0xff]
        %v699 = vld [vmem:[%s201 + $0x20] sm:$0xff]
        %v700 = vld [vmem:[%s201 + $0x28] sm:$0xff]
        %v701 = vld [vmem:[%s201 + $0x30] sm:$0xff]
        %v702 = vld [vmem:[%s201 + $0x38] sm:$0xff]
        %v703 = vld [vmem:[%s201 + $0x40] sm:$0xff]
        %v704 = vld [vmem:[%s201 + $0x48] sm:$0xff]
        %v705 = vld [vmem:[%s201 + $0x50] sm:$0xff]
        %v706 = vld [vmem:[%s201 + $0x58] sm:$0xff]
        %v707 = vld [vmem:[%s201 + $0x60] sm:$0xff]
        %v708 = vmax.f32 %v695, %v661
        %v709 = vmax.f32 %v696, %v662
        %v710 = vmax.f32 %v697, %v663
        %v711 = vmax.f32 %v698, %v664
        %v712 = vmax.f32 %v699, %v665
        %v713 = vmax.f32 %v700, %v666
        %v714 = vmax.f32 %v701, %v667
        %v715 = vmax.f32 %v702, %v668
        %v716 = vmax.f32 %v703, %v669
        %v717 = vmax.f32 %v704, %v670
        %v718 = vmax.f32 %v705, %v671
        %v719 = vmax.f32 %v706, %v672
        %v720 = vmax.f32 %v707, %v673
        %721 = vst [vmem:[%s201] sm:$0xff] %v708
        %722 = vst [vmem:[%s201 + $0x8] sm:$0xff] %v709
        %723 = vst [vmem:[%s201 + $0x10] sm:$0xff] %v710
        %724 = vst [vmem:[%s201 + $0x18] sm:$0xff] %v711
        %725 = vst [vmem:[%s201 + $0x20] sm:$0xff] %v712
        %726 = vst [vmem:[%s201 + $0x28] sm:$0xff] %v713
        %727 = vst [vmem:[%s201 + $0x30] sm:$0xff] %v714
        %728 = vst [vmem:[%s201 + $0x38] sm:$0xff] %v715
        %729 = vst [vmem:[%s201 + $0x40] sm:$0xff] %v716
        %730 = vst [vmem:[%s201 + $0x48] sm:$0xff] %v717
        %731 = vst [vmem:[%s201 + $0x50] sm:$0xff] %v718
        %732 = vst [vmem:[%s201 + $0x58] sm:$0xff] %v719
        %733 = vst [vmem:[%s201 + $0x60] sm:$0xff] %v720
      $region40: #{alexnet_conv1_pallas.1} parent=31 // pred_fallthru
        _
      %s734 = smul.u32 13, %s18
      %p735 = scmp.lt.s32.totalorder %s734, 12
      %s736 = scalar_select %p735, %s734, 12
      %s737 = smul.addr %s736, 8
      %s738 = scalar_lea.vmem %s3, %s737
      // Predicated region
      $region41: #{alexnet_conv1_pallas.1} parent=31 // pred_check
        %p739 = pneg %p114
      $region42: #{alexnet_conv1_pallas.1} parent=31 // pred_check_branch
        %741 = sbr.rel (%p739) target = $region44
      $region43: #{alexnet_conv1_pallas.1} parent=31 // pred_region
        %s742 = smul.u32 13, %s18
      $region44: #{alexnet_conv1_pallas.1} parent=31 // pred_fallthru
        _
      // Predicated region
      $region45: #{alexnet_conv1_pallas.1} parent=31 // pred_check
        %p743 = pneg %p114
      $region46: #{alexnet_conv1_pallas.1} parent=31 // pred_check_branch
        %745 = sbr.rel (%p743) target = $region48
      $region47: #{alexnet_conv1_pallas.1} parent=31 // pred_region
        %s746 = smul.u32 13, %s18
        %p747 = scmp.lt.s32.totalorder %s746, 12
        %s748 = scalar_select %p747, %s746, 12
        %s749 = smul.addr %s748, 8
        %s750 = scalar_lea.vmem %s3, %s749
      $region48: #{alexnet_conv1_pallas.1} parent=31 // pred_fallthru
        _
    $region32: #{alexnet_conv1_pallas.1} parent=5 // pred_fallthru
      _
    %p751 = scmp.le.s32.totalorder 2, %s9
    // Predicated region
    $region49: #{alexnet_conv1_pallas.1} parent=5 // pred_check
      %p752 = pneg %p751
    $region50: #{alexnet_conv1_pallas.1} parent=5 // pred_check_branch
      %754 = sbr.rel (%p752) target = $region52
    $region51: #{alexnet_conv1_pallas.1} parent=5 // pred_region
      %s755 = ssub.s32 %s9, 2
    $region52: #{alexnet_conv1_pallas.1} parent=5 // pred_fallthru
      _
  $region6: #{alexnet_conv1_pallas.1} parent=0 // loop_footer
    %s13 = sadd.s32 1, %s9
  $region7: #{alexnet_conv1_pallas.1} parent=0 // loop_footer_branch
    %8 = sbr.rel target = $region3
  $region8: #{alexnet_conv1_pallas.1} parent=0 // loop_exit
    _

</llo_original>
